<compile_context>
chip_gen: v7x
topology: tpu7x:2x2x1
jax: 0.10.0
libtpu: 0.0.40
codegen_flags: <defaults>
</compile_context>

<pallas_src>
import jax
import jax.numpy as jnp
from jax.experimental import pallas as pl
from jax.experimental.pallas import tpu as pltpu


def _make_gather_kernel(depth):
    """Build an embedding-row gather kernel with a `depth`-deep DMA window."""

    def kernel(ids_ref, w_hbm, out_ref, sems):
        # ids_ref : (n_pad,) int32 in SMEM (scalar prefetch)
        # w_hbm   : (V, E_pad) embedding table, left in HBM (pl.ANY)
        # out_ref : (tile, E_pad) VMEM output block for this grid step
        # sems    : (depth,) DMA semaphores (rolling in-flight window)
        tile = out_ref.shape[0]
        base = pl.program_id(0) * tile

        def issue(r):
            row = ids_ref[base + r]                       # SMEM scalar read
            pltpu.make_async_copy(
                w_hbm.at[row], out_ref.at[r], sems.at[r % depth]
            ).start()

        def wait(r):
            # Only transfer shape + semaphore slot matter for the wait.
            pltpu.make_async_copy(
                w_hbm.at[0], out_ref.at[r], sems.at[r % depth]
            ).wait()

        # TODO(synk): dedupe consecutive equal ids (pad tokens) with a local
        # VMEM row copy instead of a repeated HBM DMA.

        # Prologue: fill the in-flight window (static unroll, depth is small).
        for r in range(depth):
            issue(r)

        # Steady state: wait the oldest slot, then reuse it for row r + depth.
        if tile > depth:
            @pl.loop(0, tile - depth)
            def _(r):
                wait(r)
                issue(r + depth)

        # Epilogue: drain remaining in-flight copies before the pipeline
        # writes the output block back to HBM.
        for r in range(tile - depth, tile):
            wait(r)

    return kernel


def glove_encoder_forward(ids, weight, *, tile=512, dma_window=8):
    """Equivalent of GloveEncoder.forward after ques2id: embedding(ids).

    ids    : (B, T) int token ids
    weight : (V, E) embedding table (f32)
    returns: (B, T, E) embeddings, bit-exact rows of `weight`.
    """
    B, T = ids.shape
    V, E = weight.shape
    N = B * T

    # Pad embedding dim to a multiple of 128 once so every row DMA is a
    # contiguous, 128-lane-aligned transfer and writeback stores are
    # lane-dense (real GloVe E=300 -> 384).
    E_pad = int(pl.cdiv(E, 128) * 128)
    if E_pad != E:
        weight = jnp.pad(weight, ((0, 0), (0, E_pad - E)))

    # Tile: multiple of 8 rows per step, at least the DMA window deep,
    # no larger than needed for small inputs.
    tile = int(max(dma_window, min(tile, pl.cdiv(N, 8) * 8)))
    tile = int(pl.cdiv(tile, 8) * 8)
    n_pad = int(pl.cdiv(N, tile) * tile)

    # ids are addressing data: clamp (jnp.take semantics) so OOV ids can never
    # trigger an out-of-bounds HBM DMA, flatten, pad to a tile multiple.
    # TODO(synk): for very large B*T, feed ids per-block instead of one big
    # scalar-prefetch SMEM array (1-D SMEM pads to next_pow2(4N) bytes).
    ids_flat = jnp.clip(ids.reshape(-1).astype(jnp.int32), 0, V - 1)
    if n_pad != N:
        ids_flat = jnp.pad(ids_flat, (0, n_pad - N))

    itemsize = jnp.dtype(weight.dtype).itemsize
    bytes_accessed = n_pad * E_pad * itemsize * 2 + n_pad * 4
    cost = pl.CostEstimate(flops=0, transcendentals=0,
                           bytes_accessed=bytes_accessed)

    out = pl.pallas_call(
        _make_gather_kernel(dma_window),
        out_shape=jax.ShapeDtypeStruct((n_pad, E_pad), weight.dtype),
        grid_spec=pltpu.PrefetchScalarGridSpec(
            num_scalar_prefetch=1,                       # ids -> SMEM
            grid=(n_pad // tile,),
            in_specs=[
                pl.BlockSpec(memory_space=pl.ANY),       # table stays in HBM
            ],
            out_specs=pl.BlockSpec((tile, E_pad), lambda i, ids: (i, 0)),
            scratch_shapes=[pltpu.SemaphoreType.DMA((dma_window,))],
        ),
        compiler_params=pltpu.CompilerParams(
            dimension_semantics=("parallel",),           # shards across TCs on v7x
        ),
        cost_estimate=cost,
    )(ids_flat, weight)

    return out[:N, :E].reshape(B, T, E)


def ques2id(token_lists, pad_id, max_len):
    """Host-side glue mirroring question2num + sentence_pad (pad with 0)."""
    # TODO(synk): string->id tokenization (question2num) is host-side Python;
    # no Pallas equivalent, only the padded id tensor is produced here.
    padded = [lst[:max_len] + [pad_id] * (max_len - len(lst)) for lst in token_lists]
    return jnp.array(padded, dtype=jnp.int32)


if __name__ == "__main__":
    key = jax.random.PRNGKey(0)
    k_w, k_ids = jax.random.split(key)

    # Synthetic GloveEncoder config: input_size (vocab) and emsize.
    vocab_size = 64
    emsize = 128
    batch = 2
    seq_len = 8

    # Deterministic stand-in for init_embedding_weights (GloVe-like rows).
    weight = (0.6 * jax.random.normal(k_w, (vocab_size, emsize))).astype(jnp.float32)

    # Synthetic "questions": variable-length token id lists, padded with 0.
    raw_ids = jax.random.randint(k_ids, (batch, seq_len), 1, vocab_size)
    token_lists = [
        [int(t) for t in raw_ids[0, :6]],   # length-6 question (gets padded)
        [int(t) for t in raw_ids[1, :8]],   # length-8 question
    ]
    ids = ques2id(token_lists, pad_id=0, max_len=seq_len)   # (B, T) int32

    # Run the Pallas gather kernel.
    ques_embed = glove_encoder_forward(ids, weight)
    ques_embed = jax.block_until_ready(ques_embed)

    # Reference: plain gather (what nn.Embedding does, no padding_idx).
    ref = jnp.take(weight, ids, axis=0)
    assert ques_embed.shape == (batch, seq_len, emsize)
    assert ques_embed.dtype == jnp.float32
    assert jnp.array_equal(ques_embed, ref)   # row gather is bit-exact

    print("KERNEL_OK")
</pallas_src>

<mosaic_0001>
module attributes {stable_mosaic.version = 11 : i64} {
  func.func @kernel(%arg0: i32, %arg1: memref<16xi32, #tpu.memory_space<smem>>, %arg2: memref<64x128xf32, #tpu.memory_space<any>>, %arg3: memref<16x128xf32, #tpu.memory_space<vmem>>, %arg4: memref<8x!tpu.dma_semaphore, #tpu.memory_space<semaphore_mem>>) attributes {dimension_semantics = [#tpu.dimension_semantics<parallel>], iteration_bounds = array<i64: 1>, scalar_prefetch = 1 : i64, scratch_operands = 1 : i64, tpu.core_type = #tpu.core_type<tc>, window_params = [{}, {transform_indices = @transform_1, window_bounds = array<i64: 16, 128>}]} {
    %c16_i32 = arith.constant 16 : i32
    %0 = arith.muli %arg0, %c16_i32 : i32
    %c0_i32 = arith.constant 0 : i32
    %1 = arith.addi %0, %c0_i32 : i32
    %2 = arith.index_cast %1 : i32 to index
    %3 = memref.load %arg1[%2] : memref<16xi32, #tpu.memory_space<smem>>
    %c0_i32_0 = arith.constant 0 : i32
    %c0_i32_1 = arith.constant 0 : i32
    %c0_i32_2 = arith.constant 0 : i32
    %4 = tpu.memref_slice %arg2[%3, %c0_i32_2] : memref<64x128xf32, #tpu.memory_space<any>> -> memref<1x128xf32, #tpu.memory_space<any>>
    %5 = tpu.memref_squeeze %4 : memref<1x128xf32, #tpu.memory_space<any>> -> memref<128xf32, #tpu.memory_space<any>>
    %c0_i32_3 = arith.constant 0 : i32
    %6 = tpu.memref_slice %arg3[%c0_i32_0, %c0_i32_3] : memref<16x128xf32, #tpu.memory_space<vmem>> -> memref<1x128xf32, #tpu.memory_space<vmem>>
    %7 = tpu.memref_squeeze %6 : memref<1x128xf32, #tpu.memory_space<vmem>> -> memref<128xf32, #tpu.memory_space<vmem>>
    %8 = tpu.memref_slice %arg4[%c0_i32_1] : memref<8x!tpu.dma_semaphore, #tpu.memory_space<semaphore_mem>> -> memref<1x!tpu.dma_semaphore, #tpu.memory_space<semaphore_mem>>
    %9 = tpu.memref_squeeze %8 : memref<1x!tpu.dma_semaphore, #tpu.memory_space<semaphore_mem>> -> memref<!tpu.dma_semaphore, #tpu.memory_space<semaphore_mem>>
    tpu.enqueue_dma source(%5 : memref<128xf32, #tpu.memory_space<any>>) target(%7 : memref<128xf32, #tpu.memory_space<vmem>>) target_semaphore(%9 : memref<!tpu.dma_semaphore, #tpu.memory_space<semaphore_mem>>)
    %c1_i32 = arith.constant 1 : i32
    %10 = arith.addi %0, %c1_i32 : i32
    %11 = arith.index_cast %10 : i32 to index
    %12 = memref.load %arg1[%11] : memref<16xi32, #tpu.memory_space<smem>>
    %c1_i32_4 = arith.constant 1 : i32
    %c1_i32_5 = arith.constant 1 : i32
    %c0_i32_6 = arith.constant 0 : i32
    %13 = tpu.memref_slice %arg2[%12, %c0_i32_6] : memref<64x128xf32, #tpu.memory_space<any>> -> memref<1x128xf32, #tpu.memory_space<any>>
    %14 = tpu.memref_squeeze %13 : memref<1x128xf32, #tpu.memory_space<any>> -> memref<128xf32, #tpu.memory_space<any>>
    %c0_i32_7 = arith.constant 0 : i32
    %15 = tpu.memref_slice %arg3[%c1_i32_4, %c0_i32_7] : memref<16x128xf32, #tpu.memory_space<vmem>> -> memref<1x128xf32, #tpu.memory_space<vmem>>
    %16 = tpu.memref_squeeze %15 : memref<1x128xf32, #tpu.memory_space<vmem>> -> memref<128xf32, #tpu.memory_space<vmem>>
    %17 = tpu.memref_slice %arg4[%c1_i32_5] : memref<8x!tpu.dma_semaphore, #tpu.memory_space<semaphore_mem>> -> memref<1x!tpu.dma_semaphore, #tpu.memory_space<semaphore_mem>>
    %18 = tpu.memref_squeeze %17 : memref<1x!tpu.dma_semaphore, #tpu.memory_space<semaphore_mem>> -> memref<!tpu.dma_semaphore, #tpu.memory_space<semaphore_mem>>
    tpu.enqueue_dma source(%14 : memref<128xf32, #tpu.memory_space<any>>) target(%16 : memref<128xf32, #tpu.memory_space<vmem>>) target_semaphore(%18 : memref<!tpu.dma_semaphore, #tpu.memory_space<semaphore_mem>>)
    %c2_i32 = arith.constant 2 : i32
    %19 = arith.addi %0, %c2_i32 : i32
    %20 = arith.index_cast %19 : i32 to index
    %21 = memref.load %arg1[%20] : memref<16xi32, #tpu.memory_space<smem>>
    %c2_i32_8 = arith.constant 2 : i32
    %c2_i32_9 = arith.constant 2 : i32
    %c0_i32_10 = arith.constant 0 : i32
    %22 = tpu.memref_slice %arg2[%21, %c0_i32_10] : memref<64x128xf32, #tpu.memory_space<any>> -> memref<1x128xf32, #tpu.memory_space<any>>
    %23 = tpu.memref_squeeze %22 : memref<1x128xf32, #tpu.memory_space<any>> -> memref<128xf32, #tpu.memory_space<any>>
    %c0_i32_11 = arith.constant 0 : i32
    %24 = tpu.memref_slice %arg3[%c2_i32_8, %c0_i32_11] : memref<16x128xf32, #tpu.memory_space<vmem>> -> memref<1x128xf32, #tpu.memory_space<vmem>>
    %25 = tpu.memref_squeeze %24 : memref<1x128xf32, #tpu.memory_space<vmem>> -> memref<128xf32, #tpu.memory_space<vmem>>
    %26 = tpu.memref_slice %arg4[%c2_i32_9] : memref<8x!tpu.dma_semaphore, #tpu.memory_space<semaphore_mem>> -> memref<1x!tpu.dma_semaphore, #tpu.memory_space<semaphore_mem>>
    %27 = tpu.memref_squeeze %26 : memref<1x!tpu.dma_semaphore, #tpu.memory_space<semaphore_mem>> -> memref<!tpu.dma_semaphore, #tpu.memory_space<semaphore_mem>>
    tpu.enqueue_dma source(%23 : memref<128xf32, #tpu.memory_space<any>>) target(%25 : memref<128xf32, #tpu.memory_space<vmem>>) target_semaphore(%27 : memref<!tpu.dma_semaphore, #tpu.memory_space<semaphore_mem>>)
    %c3_i32 = arith.constant 3 : i32
    %28 = arith.addi %0, %c3_i32 : i32
    %29 = arith.index_cast %28 : i32 to index
    %30 = memref.load %arg1[%29] : memref<16xi32, #tpu.memory_space<smem>>
    %c3_i32_12 = arith.constant 3 : i32
    %c3_i32_13 = arith.constant 3 : i32
    %c0_i32_14 = arith.constant 0 : i32
    %31 = tpu.memref_slice %arg2[%30, %c0_i32_14] : memref<64x128xf32, #tpu.memory_space<any>> -> memref<1x128xf32, #tpu.memory_space<any>>
    %32 = tpu.memref_squeeze %31 : memref<1x128xf32, #tpu.memory_space<any>> -> memref<128xf32, #tpu.memory_space<any>>
    %c0_i32_15 = arith.constant 0 : i32
    %33 = tpu.memref_slice %arg3[%c3_i32_12, %c0_i32_15] : memref<16x128xf32, #tpu.memory_space<vmem>> -> memref<1x128xf32, #tpu.memory_space<vmem>>
    %34 = tpu.memref_squeeze %33 : memref<1x128xf32, #tpu.memory_space<vmem>> -> memref<128xf32, #tpu.memory_space<vmem>>
    %35 = tpu.memref_slice %arg4[%c3_i32_13] : memref<8x!tpu.dma_semaphore, #tpu.memory_space<semaphore_mem>> -> memref<1x!tpu.dma_semaphore, #tpu.memory_space<semaphore_mem>>
    %36 = tpu.memref_squeeze %35 : memref<1x!tpu.dma_semaphore, #tpu.memory_space<semaphore_mem>> -> memref<!tpu.dma_semaphore, #tpu.memory_space<semaphore_mem>>
    tpu.enqueue_dma source(%32 : memref<128xf32, #tpu.memory_space<any>>) target(%34 : memref<128xf32, #tpu.memory_space<vmem>>) target_semaphore(%36 : memref<!tpu.dma_semaphore, #tpu.memory_space<semaphore_mem>>)
    %c4_i32 = arith.constant 4 : i32
    %37 = arith.addi %0, %c4_i32 : i32
    %38 = arith.index_cast %37 : i32 to index
    %39 = memref.load %arg1[%38] : memref<16xi32, #tpu.memory_space<smem>>
    %c4_i32_16 = arith.constant 4 : i32
    %c4_i32_17 = arith.constant 4 : i32
    %c0_i32_18 = arith.constant 0 : i32
    %40 = tpu.memref_slice %arg2[%39, %c0_i32_18] : memref<64x128xf32, #tpu.memory_space<any>> -> memref<1x128xf32, #tpu.memory_space<any>>
    %41 = tpu.memref_squeeze %40 : memref<1x128xf32, #tpu.memory_space<any>> -> memref<128xf32, #tpu.memory_space<any>>
    %c0_i32_19 = arith.constant 0 : i32
    %42 = tpu.memref_slice %arg3[%c4_i32_16, %c0_i32_19] : memref<16x128xf32, #tpu.memory_space<vmem>> -> memref<1x128xf32, #tpu.memory_space<vmem>>
    %43 = tpu.memref_squeeze %42 : memref<1x128xf32, #tpu.memory_space<vmem>> -> memref<128xf32, #tpu.memory_space<vmem>>
    %44 = tpu.memref_slice %arg4[%c4_i32_17] : memref<8x!tpu.dma_semaphore, #tpu.memory_space<semaphore_mem>> -> memref<1x!tpu.dma_semaphore, #tpu.memory_space<semaphore_mem>>
    %45 = tpu.memref_squeeze %44 : memref<1x!tpu.dma_semaphore, #tpu.memory_space<semaphore_mem>> -> memref<!tpu.dma_semaphore, #tpu.memory_space<semaphore_mem>>
    tpu.enqueue_dma source(%41 : memref<128xf32, #tpu.memory_space<any>>) target(%43 : memref<128xf32, #tpu.memory_space<vmem>>) target_semaphore(%45 : memref<!tpu.dma_semaphore, #tpu.memory_space<semaphore_mem>>)
    %c5_i32 = arith.constant 5 : i32
    %46 = arith.addi %0, %c5_i32 : i32
    %47 = arith.index_cast %46 : i32 to index
    %48 = memref.load %arg1[%47] : memref<16xi32, #tpu.memory_space<smem>>
    %c5_i32_20 = arith.constant 5 : i32
    %c5_i32_21 = arith.constant 5 : i32
    %c0_i32_22 = arith.constant 0 : i32
    %49 = tpu.memref_slice %arg2[%48, %c0_i32_22] : memref<64x128xf32, #tpu.memory_space<any>> -> memref<1x128xf32, #tpu.memory_space<any>>
    %50 = tpu.memref_squeeze %49 : memref<1x128xf32, #tpu.memory_space<any>> -> memref<128xf32, #tpu.memory_space<any>>
    %c0_i32_23 = arith.constant 0 : i32
    %51 = tpu.memref_slice %arg3[%c5_i32_20, %c0_i32_23] : memref<16x128xf32, #tpu.memory_space<vmem>> -> memref<1x128xf32, #tpu.memory_space<vmem>>
    %52 = tpu.memref_squeeze %51 : memref<1x128xf32, #tpu.memory_space<vmem>> -> memref<128xf32, #tpu.memory_space<vmem>>
    %53 = tpu.memref_slice %arg4[%c5_i32_21] : memref<8x!tpu.dma_semaphore, #tpu.memory_space<semaphore_mem>> -> memref<1x!tpu.dma_semaphore, #tpu.memory_space<semaphore_mem>>
    %54 = tpu.memref_squeeze %53 : memref<1x!tpu.dma_semaphore, #tpu.memory_space<semaphore_mem>> -> memref<!tpu.dma_semaphore, #tpu.memory_space<semaphore_mem>>
    tpu.enqueue_dma source(%50 : memref<128xf32, #tpu.memory_space<any>>) target(%52 : memref<128xf32, #tpu.memory_space<vmem>>) target_semaphore(%54 : memref<!tpu.dma_semaphore, #tpu.memory_space<semaphore_mem>>)
    %c6_i32 = arith.constant 6 : i32
    %55 = arith.addi %0, %c6_i32 : i32
    %56 = arith.index_cast %55 : i32 to index
    %57 = memref.load %arg1[%56] : memref<16xi32, #tpu.memory_space<smem>>
    %c6_i32_24 = arith.constant 6 : i32
    %c6_i32_25 = arith.constant 6 : i32
    %c0_i32_26 = arith.constant 0 : i32
    %58 = tpu.memref_slice %arg2[%57, %c0_i32_26] : memref<64x128xf32, #tpu.memory_space<any>> -> memref<1x128xf32, #tpu.memory_space<any>>
    %59 = tpu.memref_squeeze %58 : memref<1x128xf32, #tpu.memory_space<any>> -> memref<128xf32, #tpu.memory_space<any>>
    %c0_i32_27 = arith.constant 0 : i32
    %60 = tpu.memref_slice %arg3[%c6_i32_24, %c0_i32_27] : memref<16x128xf32, #tpu.memory_space<vmem>> -> memref<1x128xf32, #tpu.memory_space<vmem>>
    %61 = tpu.memref_squeeze %60 : memref<1x128xf32, #tpu.memory_space<vmem>> -> memref<128xf32, #tpu.memory_space<vmem>>
    %62 = tpu.memref_slice %arg4[%c6_i32_25] : memref<8x!tpu.dma_semaphore, #tpu.memory_space<semaphore_mem>> -> memref<1x!tpu.dma_semaphore, #tpu.memory_space<semaphore_mem>>
    %63 = tpu.memref_squeeze %62 : memref<1x!tpu.dma_semaphore, #tpu.memory_space<semaphore_mem>> -> memref<!tpu.dma_semaphore, #tpu.memory_space<semaphore_mem>>
    tpu.enqueue_dma source(%59 : memref<128xf32, #tpu.memory_space<any>>) target(%61 : memref<128xf32, #tpu.memory_space<vmem>>) target_semaphore(%63 : memref<!tpu.dma_semaphore, #tpu.memory_space<semaphore_mem>>)
    %c7_i32 = arith.constant 7 : i32
    %64 = arith.addi %0, %c7_i32 : i32
    %65 = arith.index_cast %64 : i32 to index
    %66 = memref.load %arg1[%65] : memref<16xi32, #tpu.memory_space<smem>>
    %c7_i32_28 = arith.constant 7 : i32
    %c7_i32_29 = arith.constant 7 : i32
    %c0_i32_30 = arith.constant 0 : i32
    %67 = tpu.memref_slice %arg2[%66, %c0_i32_30] : memref<64x128xf32, #tpu.memory_space<any>> -> memref<1x128xf32, #tpu.memory_space<any>>
    %68 = tpu.memref_squeeze %67 : memref<1x128xf32, #tpu.memory_space<any>> -> memref<128xf32, #tpu.memory_space<any>>
    %c0_i32_31 = arith.constant 0 : i32
    %69 = tpu.memref_slice %arg3[%c7_i32_28, %c0_i32_31] : memref<16x128xf32, #tpu.memory_space<vmem>> -> memref<1x128xf32, #tpu.memory_space<vmem>>
    %70 = tpu.memref_squeeze %69 : memref<1x128xf32, #tpu.memory_space<vmem>> -> memref<128xf32, #tpu.memory_space<vmem>>
    %71 = tpu.memref_slice %arg4[%c7_i32_29] : memref<8x!tpu.dma_semaphore, #tpu.memory_space<semaphore_mem>> -> memref<1x!tpu.dma_semaphore, #tpu.memory_space<semaphore_mem>>
    %72 = tpu.memref_squeeze %71 : memref<1x!tpu.dma_semaphore, #tpu.memory_space<semaphore_mem>> -> memref<!tpu.dma_semaphore, #tpu.memory_space<semaphore_mem>>
    tpu.enqueue_dma source(%68 : memref<128xf32, #tpu.memory_space<any>>) target(%70 : memref<128xf32, #tpu.memory_space<vmem>>) target_semaphore(%72 : memref<!tpu.dma_semaphore, #tpu.memory_space<semaphore_mem>>)
    %c0_i32_32 = arith.constant 0 : i32
    %c8_i32 = arith.constant 8 : i32
    %73 = arith.addi %c0_i32_32, %c8_i32 : i32
    %c1_i32_33 = arith.constant 1 : i32
    scf.for %arg5 = %c0_i32_32 to %73 step %c1_i32_33  : i32 {
      %c1_i32_68 = arith.constant 1 : i32
      %122 = arith.muli %arg5, %c1_i32_68 : i32
      %c0_i32_69 = arith.constant 0 : i32
      %123 = arith.addi %c0_i32_69, %122 : i32
      %c8_i32_70 = arith.constant 8 : i32
      %c0_i32_71 = arith.constant 0 : i32
      %124 = arith.cmpi eq, %c8_i32_70, %c0_i32_71 : i32
      %c1_i32_72 = arith.constant 1 : i32
      %125 = arith.select %124, %c1_i32_72, %c8_i32_70 : i32
      %126 = arith.remsi %123, %125 : i32
      %c0_i32_73 = arith.constant 0 : i32
      %127 = arith.cmpi ne, %126, %c0_i32_73 : i32
      %c0_i32_74 = arith.constant 0 : i32
      %128 = arith.cmpi slt, %126, %c0_i32_74 : i32
      %c0_i32_75 = arith.constant 0 : i32
      %129 = arith.cmpi slt, %125, %c0_i32_75 : i32
      %130 = arith.xori %128, %129 : i1
      %131 = arith.andi %130, %127 : i1
      %132 = arith.addi %126, %125 : i32
      %133 = arith.select %131, %132, %126 : i32
      %c0_i32_76 = arith.constant 0 : i32
      %c0_i32_77 = arith.constant 0 : i32
      %134 = tpu.memref_slice %arg2[%c0_i32_76, %c0_i32_77] : memref<64x128xf32, #tpu.memory_space<any>> -> memref<1x128xf32, #tpu.memory_space<any>>
      %135 = tpu.memref_squeeze %134 : memref<1x128xf32, #tpu.memory_space<any>> -> memref<128xf32, #tpu.memory_space<any>>
      %c0_i32_78 = arith.constant 0 : i32
      %136 = tpu.memref_slice %arg3[%123, %c0_i32_78] : memref<16x128xf32, #tpu.memory_space<vmem>> -> memref<1x128xf32, #tpu.memory_space<vmem>>
      %137 = tpu.memref_squeeze %136 : memref<1x128xf32, #tpu.memory_space<vmem>> -> memref<128xf32, #tpu.memory_space<vmem>>
      %138 = tpu.memref_slice %arg4[%133] : memref<8x!tpu.dma_semaphore, #tpu.memory_space<semaphore_mem>> -> memref<1x!tpu.dma_semaphore, #tpu.memory_space<semaphore_mem>>
      %139 = tpu.memref_squeeze %138 : memref<1x!tpu.dma_semaphore, #tpu.memory_space<semaphore_mem>> -> memref<!tpu.dma_semaphore, #tpu.memory_space<semaphore_mem>>
      tpu.wait_dma2 semaphore(%139 : memref<!tpu.dma_semaphore, #tpu.memory_space<semaphore_mem>>) src(%135 : memref<128xf32, #tpu.memory_space<any>>) dst(%137 : memref<128xf32, #tpu.memory_space<vmem>>)
      %c8_i32_79 = arith.constant 8 : i32
      %140 = arith.addi %123, %c8_i32_79 : i32
      %141 = arith.addi %0, %140 : i32
      %142 = arith.index_cast %141 : i32 to index
      %143 = memref.load %arg1[%142] : memref<16xi32, #tpu.memory_space<smem>>
      %c8_i32_80 = arith.constant 8 : i32
      %c0_i32_81 = arith.constant 0 : i32
      %144 = arith.cmpi eq, %c8_i32_80, %c0_i32_81 : i32
      %c1_i32_82 = arith.constant 1 : i32
      %145 = arith.select %144, %c1_i32_82, %c8_i32_80 : i32
      %146 = arith.remsi %140, %145 : i32
      %c0_i32_83 = arith.constant 0 : i32
      %147 = arith.cmpi ne, %146, %c0_i32_83 : i32
      %c0_i32_84 = arith.constant 0 : i32
      %148 = arith.cmpi slt, %146, %c0_i32_84 : i32
      %c0_i32_85 = arith.constant 0 : i32
      %149 = arith.cmpi slt, %145, %c0_i32_85 : i32
      %150 = arith.xori %148, %149 : i1
      %151 = arith.andi %150, %147 : i1
      %152 = arith.addi %146, %145 : i32
      %153 = arith.select %151, %152, %146 : i32
      %c0_i32_86 = arith.constant 0 : i32
      %154 = tpu.memref_slice %arg2[%143, %c0_i32_86] : memref<64x128xf32, #tpu.memory_space<any>> -> memref<1x128xf32, #tpu.memory_space<any>>
      %155 = tpu.memref_squeeze %154 : memref<1x128xf32, #tpu.memory_space<any>> -> memref<128xf32, #tpu.memory_space<any>>
      %c0_i32_87 = arith.constant 0 : i32
      %156 = tpu.memref_slice %arg3[%140, %c0_i32_87] : memref<16x128xf32, #tpu.memory_space<vmem>> -> memref<1x128xf32, #tpu.memory_space<vmem>>
      %157 = tpu.memref_squeeze %156 : memref<1x128xf32, #tpu.memory_space<vmem>> -> memref<128xf32, #tpu.memory_space<vmem>>
      %158 = tpu.memref_slice %arg4[%153] : memref<8x!tpu.dma_semaphore, #tpu.memory_space<semaphore_mem>> -> memref<1x!tpu.dma_semaphore, #tpu.memory_space<semaphore_mem>>
      %159 = tpu.memref_squeeze %158 : memref<1x!tpu.dma_semaphore, #tpu.memory_space<semaphore_mem>> -> memref<!tpu.dma_semaphore, #tpu.memory_space<semaphore_mem>>
      tpu.enqueue_dma source(%155 : memref<128xf32, #tpu.memory_space<any>>) target(%157 : memref<128xf32, #tpu.memory_space<vmem>>) target_semaphore(%159 : memref<!tpu.dma_semaphore, #tpu.memory_space<semaphore_mem>>)
    }
    %c8_i32_34 = arith.constant 8 : i32
    %c0_i32_35 = arith.constant 0 : i32
    %c8_i32_36 = arith.constant 8 : i32
    %c0_i32_37 = arith.constant 0 : i32
    %c0_i32_38 = arith.constant 0 : i32
    %74 = tpu.memref_slice %arg2[%c0_i32_35, %c0_i32_38] : memref<64x128xf32, #tpu.memory_space<any>> -> memref<1x128xf32, #tpu.memory_space<any>>
    %75 = tpu.memref_squeeze %74 : memref<1x128xf32, #tpu.memory_space<any>> -> memref<128xf32, #tpu.memory_space<any>>
    %c0_i32_39 = arith.constant 0 : i32
    %76 = tpu.memref_slice %arg3[%c8_i32_36, %c0_i32_39] : memref<16x128xf32, #tpu.memory_space<vmem>> -> memref<1x128xf32, #tpu.memory_space<vmem>>
    %77 = tpu.memref_squeeze %76 : memref<1x128xf32, #tpu.memory_space<vmem>> -> memref<128xf32, #tpu.memory_space<vmem>>
    %78 = tpu.memref_slice %arg4[%c0_i32_37] : memref<8x!tpu.dma_semaphore, #tpu.memory_space<semaphore_mem>> -> memref<1x!tpu.dma_semaphore, #tpu.memory_space<semaphore_mem>>
    %79 = tpu.memref_squeeze %78 : memref<1x!tpu.dma_semaphore, #tpu.memory_space<semaphore_mem>> -> memref<!tpu.dma_semaphore, #tpu.memory_space<semaphore_mem>>
    tpu.wait_dma2 semaphore(%79 : memref<!tpu.dma_semaphore, #tpu.memory_space<semaphore_mem>>) src(%75 : memref<128xf32, #tpu.memory_space<any>>) dst(%77 : memref<128xf32, #tpu.memory_space<vmem>>)
    %c0_i32_40 = arith.constant 0 : i32
    %c9_i32 = arith.constant 9 : i32
    %c1_i32_41 = arith.constant 1 : i32
    %c0_i32_42 = arith.constant 0 : i32
    %80 = tpu.memref_slice %arg2[%c0_i32_40, %c0_i32_42] : memref<64x128xf32, #tpu.memory_space<any>> -> memref<1x128xf32, #tpu.memory_space<any>>
    %81 = tpu.memref_squeeze %80 : memref<1x128xf32, #tpu.memory_space<any>> -> memref<128xf32, #tpu.memory_space<any>>
    %c0_i32_43 = arith.constant 0 : i32
    %82 = tpu.memref_slice %arg3[%c9_i32, %c0_i32_43] : memref<16x128xf32, #tpu.memory_space<vmem>> -> memref<1x128xf32, #tpu.memory_space<vmem>>
    %83 = tpu.memref_squeeze %82 : memref<1x128xf32, #tpu.memory_space<vmem>> -> memref<128xf32, #tpu.memory_space<vmem>>
    %84 = tpu.memref_slice %arg4[%c1_i32_41] : memref<8x!tpu.dma_semaphore, #tpu.memory_space<semaphore_mem>> -> memref<1x!tpu.dma_semaphore, #tpu.memory_space<semaphore_mem>>
    %85 = tpu.memref_squeeze %84 : memref<1x!tpu.dma_semaphore, #tpu.memory_space<semaphore_mem>> -> memref<!tpu.dma_semaphore, #tpu.memory_space<semaphore_mem>>
    tpu.wait_dma2 semaphore(%85 : memref<!tpu.dma_semaphore, #tpu.memory_space<semaphore_mem>>) src(%81 : memref<128xf32, #tpu.memory_space<any>>) dst(%83 : memref<128xf32, #tpu.memory_space<vmem>>)
    %c0_i32_44 = arith.constant 0 : i32
    %c10_i32 = arith.constant 10 : i32
    %c2_i32_45 = arith.constant 2 : i32
    %c0_i32_46 = arith.constant 0 : i32
    %86 = tpu.memref_slice %arg2[%c0_i32_44, %c0_i32_46] : memref<64x128xf32, #tpu.memory_space<any>> -> memref<1x128xf32, #tpu.memory_space<any>>
    %87 = tpu.memref_squeeze %86 : memref<1x128xf32, #tpu.memory_space<any>> -> memref<128xf32, #tpu.memory_space<any>>
    %c0_i32_47 = arith.constant 0 : i32
    %88 = tpu.memref_slice %arg3[%c10_i32, %c0_i32_47] : memref<16x128xf32, #tpu.memory_space<vmem>> -> memref<1x128xf32, #tpu.memory_space<vmem>>
    %89 = tpu.memref_squeeze %88 : memref<1x128xf32, #tpu.memory_space<vmem>> -> memref<128xf32, #tpu.memory_space<vmem>>
    %90 = tpu.memref_slice %arg4[%c2_i32_45] : memref<8x!tpu.dma_semaphore, #tpu.memory_space<semaphore_mem>> -> memref<1x!tpu.dma_semaphore, #tpu.memory_space<semaphore_mem>>
    %91 = tpu.memref_squeeze %90 : memref<1x!tpu.dma_semaphore, #tpu.memory_space<semaphore_mem>> -> memref<!tpu.dma_semaphore, #tpu.memory_space<semaphore_mem>>
    tpu.wait_dma2 semaphore(%91 : memref<!tpu.dma_semaphore, #tpu.memory_space<semaphore_mem>>) src(%87 : memref<128xf32, #tpu.memory_space<any>>) dst(%89 : memref<128xf32, #tpu.memory_space<vmem>>)
    %c0_i32_48 = arith.constant 0 : i32
    %c11_i32 = arith.constant 11 : i32
    %c3_i32_49 = arith.constant 3 : i32
    %c0_i32_50 = arith.constant 0 : i32
    %92 = tpu.memref_slice %arg2[%c0_i32_48, %c0_i32_50] : memref<64x128xf32, #tpu.memory_space<any>> -> memref<1x128xf32, #tpu.memory_space<any>>
    %93 = tpu.memref_squeeze %92 : memref<1x128xf32, #tpu.memory_space<any>> -> memref<128xf32, #tpu.memory_space<any>>
    %c0_i32_51 = arith.constant 0 : i32
    %94 = tpu.memref_slice %arg3[%c11_i32, %c0_i32_51] : memref<16x128xf32, #tpu.memory_space<vmem>> -> memref<1x128xf32, #tpu.memory_space<vmem>>
    %95 = tpu.memref_squeeze %94 : memref<1x128xf32, #tpu.memory_space<vmem>> -> memref<128xf32, #tpu.memory_space<vmem>>
    %96 = tpu.memref_slice %arg4[%c3_i32_49] : memref<8x!tpu.dma_semaphore, #tpu.memory_space<semaphore_mem>> -> memref<1x!tpu.dma_semaphore, #tpu.memory_space<semaphore_mem>>
    %97 = tpu.memref_squeeze %96 : memref<1x!tpu.dma_semaphore, #tpu.memory_space<semaphore_mem>> -> memref<!tpu.dma_semaphore, #tpu.memory_space<semaphore_mem>>
    tpu.wait_dma2 semaphore(%97 : memref<!tpu.dma_semaphore, #tpu.memory_space<semaphore_mem>>) src(%93 : memref<128xf32, #tpu.memory_space<any>>) dst(%95 : memref<128xf32, #tpu.memory_space<vmem>>)
    %c0_i32_52 = arith.constant 0 : i32
    %c12_i32 = arith.constant 12 : i32
    %c4_i32_53 = arith.constant 4 : i32
    %c0_i32_54 = arith.constant 0 : i32
    %98 = tpu.memref_slice %arg2[%c0_i32_52, %c0_i32_54] : memref<64x128xf32, #tpu.memory_space<any>> -> memref<1x128xf32, #tpu.memory_space<any>>
    %99 = tpu.memref_squeeze %98 : memref<1x128xf32, #tpu.memory_space<any>> -> memref<128xf32, #tpu.memory_space<any>>
    %c0_i32_55 = arith.constant 0 : i32
    %100 = tpu.memref_slice %arg3[%c12_i32, %c0_i32_55] : memref<16x128xf32, #tpu.memory_space<vmem>> -> memref<1x128xf32, #tpu.memory_space<vmem>>
    %101 = tpu.memref_squeeze %100 : memref<1x128xf32, #tpu.memory_space<vmem>> -> memref<128xf32, #tpu.memory_space<vmem>>
    %102 = tpu.memref_slice %arg4[%c4_i32_53] : memref<8x!tpu.dma_semaphore, #tpu.memory_space<semaphore_mem>> -> memref<1x!tpu.dma_semaphore, #tpu.memory_space<semaphore_mem>>
    %103 = tpu.memref_squeeze %102 : memref<1x!tpu.dma_semaphore, #tpu.memory_space<semaphore_mem>> -> memref<!tpu.dma_semaphore, #tpu.memory_space<semaphore_mem>>
    tpu.wait_dma2 semaphore(%103 : memref<!tpu.dma_semaphore, #tpu.memory_space<semaphore_mem>>) src(%99 : memref<128xf32, #tpu.memory_space<any>>) dst(%101 : memref<128xf32, #tpu.memory_space<vmem>>)
    %c0_i32_56 = arith.constant 0 : i32
    %c13_i32 = arith.constant 13 : i32
    %c5_i32_57 = arith.constant 5 : i32
    %c0_i32_58 = arith.constant 0 : i32
    %104 = tpu.memref_slice %arg2[%c0_i32_56, %c0_i32_58] : memref<64x128xf32, #tpu.memory_space<any>> -> memref<1x128xf32, #tpu.memory_space<any>>
    %105 = tpu.memref_squeeze %104 : memref<1x128xf32, #tpu.memory_space<any>> -> memref<128xf32, #tpu.memory_space<any>>
    %c0_i32_59 = arith.constant 0 : i32
    %106 = tpu.memref_slice %arg3[%c13_i32, %c0_i32_59] : memref<16x128xf32, #tpu.memory_space<vmem>> -> memref<1x128xf32, #tpu.memory_space<vmem>>
    %107 = tpu.memref_squeeze %106 : memref<1x128xf32, #tpu.memory_space<vmem>> -> memref<128xf32, #tpu.memory_space<vmem>>
    %108 = tpu.memref_slice %arg4[%c5_i32_57] : memref<8x!tpu.dma_semaphore, #tpu.memory_space<semaphore_mem>> -> memref<1x!tpu.dma_semaphore, #tpu.memory_space<semaphore_mem>>
    %109 = tpu.memref_squeeze %108 : memref<1x!tpu.dma_semaphore, #tpu.memory_space<semaphore_mem>> -> memref<!tpu.dma_semaphore, #tpu.memory_space<semaphore_mem>>
    tpu.wait_dma2 semaphore(%109 : memref<!tpu.dma_semaphore, #tpu.memory_space<semaphore_mem>>) src(%105 : memref<128xf32, #tpu.memory_space<any>>) dst(%107 : memref<128xf32, #tpu.memory_space<vmem>>)
    %c0_i32_60 = arith.constant 0 : i32
    %c14_i32 = arith.constant 14 : i32
    %c6_i32_61 = arith.constant 6 : i32
    %c0_i32_62 = arith.constant 0 : i32
    %110 = tpu.memref_slice %arg2[%c0_i32_60, %c0_i32_62] : memref<64x128xf32, #tpu.memory_space<any>> -> memref<1x128xf32, #tpu.memory_space<any>>
    %111 = tpu.memref_squeeze %110 : memref<1x128xf32, #tpu.memory_space<any>> -> memref<128xf32, #tpu.memory_space<any>>
    %c0_i32_63 = arith.constant 0 : i32
    %112 = tpu.memref_slice %arg3[%c14_i32, %c0_i32_63] : memref<16x128xf32, #tpu.memory_space<vmem>> -> memref<1x128xf32, #tpu.memory_space<vmem>>
    %113 = tpu.memref_squeeze %112 : memref<1x128xf32, #tpu.memory_space<vmem>> -> memref<128xf32, #tpu.memory_space<vmem>>
    %114 = tpu.memref_slice %arg4[%c6_i32_61] : memref<8x!tpu.dma_semaphore, #tpu.memory_space<semaphore_mem>> -> memref<1x!tpu.dma_semaphore, #tpu.memory_space<semaphore_mem>>
    %115 = tpu.memref_squeeze %114 : memref<1x!tpu.dma_semaphore, #tpu.memory_space<semaphore_mem>> -> memref<!tpu.dma_semaphore, #tpu.memory_space<semaphore_mem>>
    tpu.wait_dma2 semaphore(%115 : memref<!tpu.dma_semaphore, #tpu.memory_space<semaphore_mem>>) src(%111 : memref<128xf32, #tpu.memory_space<any>>) dst(%113 : memref<128xf32, #tpu.memory_space<vmem>>)
    %c0_i32_64 = arith.constant 0 : i32
    %c15_i32 = arith.constant 15 : i32
    %c7_i32_65 = arith.constant 7 : i32
    %c0_i32_66 = arith.constant 0 : i32
    %116 = tpu.memref_slice %arg2[%c0_i32_64, %c0_i32_66] : memref<64x128xf32, #tpu.memory_space<any>> -> memref<1x128xf32, #tpu.memory_space<any>>
    %117 = tpu.memref_squeeze %116 : memref<1x128xf32, #tpu.memory_space<any>> -> memref<128xf32, #tpu.memory_space<any>>
    %c0_i32_67 = arith.constant 0 : i32
    %118 = tpu.memref_slice %arg3[%c15_i32, %c0_i32_67] : memref<16x128xf32, #tpu.memory_space<vmem>> -> memref<1x128xf32, #tpu.memory_space<vmem>>
    %119 = tpu.memref_squeeze %118 : memref<1x128xf32, #tpu.memory_space<vmem>> -> memref<128xf32, #tpu.memory_space<vmem>>
    %120 = tpu.memref_slice %arg4[%c7_i32_65] : memref<8x!tpu.dma_semaphore, #tpu.memory_space<semaphore_mem>> -> memref<1x!tpu.dma_semaphore, #tpu.memory_space<semaphore_mem>>
    %121 = tpu.memref_squeeze %120 : memref<1x!tpu.dma_semaphore, #tpu.memory_space<semaphore_mem>> -> memref<!tpu.dma_semaphore, #tpu.memory_space<semaphore_mem>>
    tpu.wait_dma2 semaphore(%121 : memref<!tpu.dma_semaphore, #tpu.memory_space<semaphore_mem>>) src(%117 : memref<128xf32, #tpu.memory_space<any>>) dst(%119 : memref<128xf32, #tpu.memory_space<vmem>>)
    return
  }
  func.func @transform_1(%arg0: i32, %arg1: memref<16xi32, #tpu.memory_space<smem>>) -> (i32, i32) {
    %c0_i32 = arith.constant 0 : i32
    %c0_i32_0 = arith.constant 0 : i32
    return %arg0, %c0_i32 : i32, i32
  }
}

</mosaic_0001>

<llo_original>
// kernel: tpu_custom_call.1
$region0: #{tpu_custom_call.1}
  #allocation0 [shape = 'u32[]', space=smem, size = 0x4, offset = 0x4, fixed_abs, tag = 'smem constant byte address 0x4 - core index']
  #allocation1 [shape = 'u32[144,128]{1,0:T(1,128)}', space=vmem, size = 0x12000, scoped, tag = 'internal scratch']
  #allocation2 [shape = 's32[8]{0}', space=sflag, size = 0x20, scoped, tag = 'scratch operand']
  #allocation3 [shape = 's32[1]{0}', space=sflag, size = 0x4, scoped, tag = 'scoped memory for tpu_custom_call.1']
  #allocation4 [shape = 'u8[512]{0}', space=smem, size = 0x200, scoped, tag = 'prefetched SMEM operand 0']
  #allocation7 [shape = 's32[]', space=sflag, size = 0x4, offset = 0, fixed_abs, tag = 'sflag constant byte address 0x0 - dummy sync flag']
  #allocation8 [shape = 's32[]', space=sflag, size = 0x4, offset = 0, fixed_abs, tag = 'sflag constant byte address 0x0 - dummy sync flag']
  #allocation9 [shape = 'u32[]', space=smem, size = 0x4, offset = 0x44, fixed_abs, tag = 'smem constant byte address 0x44 - assertion arg 0']
  #allocation10 [shape = 'u32[]', space=smem, size = 0x4, offset = 0x48, fixed_abs, tag = 'smem constant byte address 0x48 - assertion arg 1']
  #allocation11 [shape = 's32[]', space=sflag, size = 0x4, offset = 0, fixed_abs, tag = 'sflag constant byte address 0x0 - dummy sync flag']
  #allocation12 [shape = 's32[]', space=sflag, size = 0x4, offset = 0, fixed_abs, tag = 'sflag constant byte address 0x0 - dummy sync flag']
  #allocation13 [shape = 's32[]', space=sflag, size = 0x4, offset = 0, fixed_abs, tag = 'sflag constant byte address 0x0 - dummy sync flag']
  #allocation14 [shape = 's32[]', space=sflag, size = 0x4, offset = 0, fixed_abs, tag = 'sflag constant byte address 0x0 - dummy sync flag']
  #allocation15 [shape = 's32[]', space=sflag, size = 0x4, offset = 0, fixed_abs, tag = 'sflag constant byte address 0x0 - dummy sync flag']
  #allocation16 [shape = 's32[]', space=sflag, size = 0x4, offset = 0, fixed_abs, tag = 'sflag constant byte address 0x0 - dummy sync flag']
  #allocation17 [shape = 's32[]', space=sflag, size = 0x4, offset = 0, fixed_abs, tag = 'sflag constant byte address 0x0 - dummy sync flag']
  #allocation18 [shape = 's32[]', space=sflag, size = 0x4, offset = 0, fixed_abs, tag = 'sflag constant byte address 0x0 - dummy sync flag']
  #allocation19 [shape = 's32[]', space=sflag, size = 0x4, offset = 0, fixed_abs, tag = 'sflag constant byte address 0x0 - dummy sync flag']
  #allocation20 [shape = 's32[]', space=sflag, size = 0x4, offset = 0, fixed_abs, tag = 'sflag constant byte address 0x0 - dummy sync flag']
  #allocation21 [shape = 's32[]', space=sflag, size = 0x4, offset = 0, fixed_abs, tag = 'sflag constant byte address 0x0 - dummy sync flag']
  #allocation22 [shape = 's32[]', space=sflag, size = 0x4, offset = 0, fixed_abs, tag = 'sflag constant byte address 0x0 - dummy sync flag']
  #allocation23 [shape = 's32[]', space=sflag, size = 0x4, offset = 0, fixed_abs, tag = 'sflag constant byte address 0x0 - dummy sync flag']
  #allocation24 [shape = 's32[]', space=sflag, size = 0x4, offset = 0, fixed_abs, tag = 'sflag constant byte address 0x0 - dummy sync flag']
  #allocation25 [shape = 's32[]', space=sflag, size = 0x4, offset = 0, fixed_abs, tag = 'sflag constant byte address 0x0 - dummy sync flag']
  #allocation26 [shape = 's32[]', space=sflag, size = 0x4, offset = 0, fixed_abs, tag = 'sflag constant byte address 0x0 - dummy sync flag']
  %s0 = inlined_call_operand.hbm [shape: s32[16], index: 0, kind: input, shape index: {}]
  %s1 = inlined_call_operand.hbm [shape: f32[64,128], index: 1, kind: input, shape index: {}]
  %s2 = inlined_call_operand.hbm [shape: f32[16,128], index: 2, kind: output, shape index: {}]
  %s3 = sld [smem:[#allocation0]]
  $region53: #{tpu_custom_call.1} parent=0
    _
  %s5 = ssub.s32 1, %s3
  %s6 = scalar_select 0, %s5, %s3
  %8 = dma.hbm_to_smem %s0, 16, [#allocation4], [#allocation3]
  %9 = dma.done [#allocation3], 16
  %10 = sfence
  $region1: #{tpu_custom_call.1} parent=0
    #allocation5 [shape = 'u8[8192]{0}', space=vmem, size = 0x2000, scoped, tag = 'output window, operand 0, single buffered']
    #allocation6 [shape = 's32[1]{0}', space=sflag, size = 0x4, scoped, tag = 'scoped memory for tpu_custom_call.1']
    %11 = vsyncpa [#allocation6], 0
    %s12 = smul.u32 0, 16
    %s13 = sld [smem:[#allocation4 + %s12]]
    %s14 = smul.addr %s13, 16
    %s15 = scalar_lea.hbm %s1, %s14
    // Predicated region
    $region2: #{tpu_custom_call.1} parent=1 // pred_check
      _
    $region3: #{tpu_custom_call.1} parent=1 // pred_check_branch
      %17 = sbr.rel target = $region5
    $region4: #{tpu_custom_call.1} parent=1 // pred_region
      %18 = sst [smem:[#allocation9]] [#allocation8]
      %19 = sst [smem:[#allocation10]] [#allocation7]
    $region5: #{tpu_custom_call.1} parent=1 // pred_fallthru
      _
    %21 = shalt.err (0)
    %s23 = sshll.u32 [#allocation5], 4
    %s24 = int_to_ptr.vmem [resolvable:$true] %s23
    %26 = dma.hbm_to_vmem [thread:$0]  %s15, 16, %s24, [#allocation2]
    %s27 = sadd.s32 %s12, 1
    %s28 = sld [smem:[#allocation4 + %s27]]
    %s29 = smul.addr %s28, 16
    %s30 = scalar_lea.hbm %s1, %s29
    %s31 = scalar_lea.vmem [#allocation5], 1
    %s32 = scalar_lea.sflag [#allocation2], 1
    // Predicated region
    $region6: #{tpu_custom_call.1} parent=1 // pred_check
      _
    $region7: #{tpu_custom_call.1} parent=1 // pred_check_branch
      %34 = sbr.rel target = $region9
    $region8: #{tpu_custom_call.1} parent=1 // pred_region
      %35 = sst [smem:[#allocation9]] [#allocation12]
      %36 = sst [smem:[#allocation10]] [#allocation11]
    $region9: #{tpu_custom_call.1} parent=1 // pred_fallthru
      _
    %38 = shalt.err (0)
    %s40 = sshll.u32 %s31, 4
    %s41 = int_to_ptr.vmem [resolvable:$true] %s40
    %43 = dma.hbm_to_vmem [thread:$0]  %s30, 16, %s41, %s32
    %s44 = sadd.s32 %s12, 2
    %s45 = sld [smem:[#allocation4 + %s44]]
    %s46 = smul.addr %s45, 16
    %s47 = scalar_lea.hbm %s1, %s46
    %s48 = scalar_lea.vmem [#allocation5], 2
    %s49 = scalar_lea.sflag [#allocation2], 2
    // Predicated region
    $region10: #{tpu_custom_call.1} parent=1 // pred_check
      _
    $region11: #{tpu_custom_call.1} parent=1 // pred_check_branch
      %51 = sbr.rel target = $region13
    $region12: #{tpu_custom_call.1} parent=1 // pred_region
      %52 = sst [smem:[#allocation9]] [#allocation14]
      %53 = sst [smem:[#allocation10]] [#allocation13]
    $region13: #{tpu_custom_call.1} parent=1 // pred_fallthru
      _
    %55 = shalt.err (0)
    %s57 = sshll.u32 %s48, 4
    %s58 = int_to_ptr.vmem [resolvable:$true] %s57
    %60 = dma.hbm_to_vmem [thread:$0]  %s47, 16, %s58, %s49
    %s61 = sadd.s32 %s12, 3
    %s62 = sld [smem:[#allocation4 + %s61]]
    %s63 = smul.addr %s62, 16
    %s64 = scalar_lea.hbm %s1, %s63
    %s65 = scalar_lea.vmem [#allocation5], 3
    %s66 = scalar_lea.sflag [#allocation2], 3
    // Predicated region
    $region14: #{tpu_custom_call.1} parent=1 // pred_check
      _
    $region15: #{tpu_custom_call.1} parent=1 // pred_check_branch
      %68 = sbr.rel target = $region17
    $region16: #{tpu_custom_call.1} parent=1 // pred_region
      %69 = sst [smem:[#allocation9]] [#allocation16]
      %70 = sst [smem:[#allocation10]] [#allocation15]
    $region17: #{tpu_custom_call.1} parent=1 // pred_fallthru
      _
    %72 = shalt.err (0)
    %s74 = sshll.u32 %s65, 4
    %s75 = int_to_ptr.vmem [resolvable:$true] %s74
    %77 = dma.hbm_to_vmem [thread:$0]  %s64, 16, %s75, %s66
    %s78 = sadd.s32 %s12, 4
    %s79 = sld [smem:[#allocation4 + %s78]]
    %s80 = smul.addr %s79, 16
    %s81 = scalar_lea.hbm %s1, %s80
    %s82 = scalar_lea.vmem [#allocation5], 4
    %s83 = scalar_lea.sflag [#allocation2], 4
    // Predicated region
    $region18: #{tpu_custom_call.1} parent=1 // pred_check
      _
    $region19: #{tpu_custom_call.1} parent=1 // pred_check_branch
      %85 = sbr.rel target = $region21
    $region20: #{tpu_custom_call.1} parent=1 // pred_region
      %86 = sst [smem:[#allocation9]] [#allocation18]
      %87 = sst [smem:[#allocation10]] [#allocation17]
    $region21: #{tpu_custom_call.1} parent=1 // pred_fallthru
      _
    %89 = shalt.err (0)
    %s91 = sshll.u32 %s82, 4
    %s92 = int_to_ptr.vmem [resolvable:$true] %s91
    %94 = dma.hbm_to_vmem [thread:$0]  %s81, 16, %s92, %s83
    %s95 = sadd.s32 %s12, 5
    %s96 = sld [smem:[#allocation4 + %s95]]
    %s97 = smul.addr %s96, 16
    %s98 = scalar_lea.hbm %s1, %s97
    %s99 = scalar_lea.vmem [#allocation5], 5
    %s100 = scalar_lea.sflag [#allocation2], 5
    // Predicated region
    $region22: #{tpu_custom_call.1} parent=1 // pred_check
      _
    $region23: #{tpu_custom_call.1} parent=1 // pred_check_branch
      %102 = sbr.rel target = $region25
    $region24: #{tpu_custom_call.1} parent=1 // pred_region
      %103 = sst [smem:[#allocation9]] [#allocation20]
      %104 = sst [smem:[#allocation10]] [#allocation19]
    $region25: #{tpu_custom_call.1} parent=1 // pred_fallthru
      _
    %106 = shalt.err (0)
    %s108 = sshll.u32 %s99, 4
    %s109 = int_to_ptr.vmem [resolvable:$true] %s108
    %111 = dma.hbm_to_vmem [thread:$0]  %s98, 16, %s109, %s100
    %s112 = sadd.s32 %s12, 6
    %s113 = sld [smem:[#allocation4 + %s112]]
    %s114 = smul.addr %s113, 16
    %s115 = scalar_lea.hbm %s1, %s114
    %s116 = scalar_lea.vmem [#allocation5], 6
    %s117 = scalar_lea.sflag [#allocation2], 6
    // Predicated region
    $region26: #{tpu_custom_call.1} parent=1 // pred_check
      _
    $region27: #{tpu_custom_call.1} parent=1 // pred_check_branch
      %119 = sbr.rel target = $region29
    $region28: #{tpu_custom_call.1} parent=1 // pred_region
      %120 = sst [smem:[#allocation9]] [#allocation22]
      %121 = sst [smem:[#allocation10]] [#allocation21]
    $region29: #{tpu_custom_call.1} parent=1 // pred_fallthru
      _
    %123 = shalt.err (0)
    %s125 = sshll.u32 %s116, 4
    %s126 = int_to_ptr.vmem [resolvable:$true] %s125
    %128 = dma.hbm_to_vmem [thread:$0]  %s115, 16, %s126, %s117
    %s129 = sadd.s32 %s12, 7
    %s130 = sld [smem:[#allocation4 + %s129]]
    %s131 = smul.addr %s130, 16
    %s132 = scalar_lea.hbm %s1, %s131
    %s133 = scalar_lea.vmem [#allocation5], 7
    %s134 = scalar_lea.sflag [#allocation2], 7
    // Predicated region
    $region30: #{tpu_custom_call.1} parent=1 // pred_check
      _
    $region31: #{tpu_custom_call.1} parent=1 // pred_check_branch
      %136 = sbr.rel target = $region33
    $region32: #{tpu_custom_call.1} parent=1 // pred_region
      %137 = sst [smem:[#allocation9]] [#allocation24]
      %138 = sst [smem:[#allocation10]] [#allocation23]
    $region33: #{tpu_custom_call.1} parent=1 // pred_fallthru
      _
    %140 = shalt.err (0)
    %s142 = sshll.u32 %s133, 4
    %s143 = int_to_ptr.vmem [resolvable:$true] %s142
    %145 = dma.hbm_to_vmem [thread:$0]  %s132, 16, %s143, %s134
    loop: start=0, step=1, limit=8
    $region34: #{tpu_custom_call.1} parent=1 // loop_pre_header
      _
    $region35: #{tpu_custom_call.1} parent=1 // loop_header
      %s147 = sphi 0, %s151
      %p148 = scmp.ge.s32.totalorder %s147, 8
    $region36: #{tpu_custom_call.1} parent=1 // loop_header_branch
      %150 = sbr.rel (%p148) target = $region40
    $region37: #{tpu_custom_call.1} parent=1 // loop_body
      %p152 = scmp.lt.s32.totalorder %s147, 0
      %s153 = ssub.s32 0, %s147
      %s154 = scalar_select %p152, %s153, %s147
      %s155 = sand.u32 %s154, 7
      %s156 = ssub.s32 0, %s155
      %s157 = scalar_select %p152, %s156, %s155
      %p158 = scmp.ne.s32.totalorder %s157, 0
      %p159 = scmp.lt.s32.totalorder %s157, 0
      %p160 = pnand %p159, %p158
      %p161 = pneg %p160
      %s162 = sadd.s32 %s157, 8
      %s163 = scalar_select %p161, %s162, %s157
      %s164 = scalar_lea.sflag [#allocation2], %s163
      %166 = dma.done %s164, 16
      %s167 = sadd.s32 %s147, 8
      %s168 = sadd.s32 %s12, %s167
      %s169 = sld [smem:[#allocation4 + %s168]]
      %p170 = scmp.lt.s32.totalorder %s167, 0
      %s171 = ssub.s32 0, %s167
      %s172 = scalar_select %p170, %s171, %s167
      %s173 = sand.u32 %s172, 7
      %s174 = ssub.s32 0, %s173
      %s175 = scalar_select %p170, %s174, %s173
      %p176 = scmp.ne.s32.totalorder %s175, 0
      %p177 = scmp.lt.s32.totalorder %s175, 0
      %p178 = pnand %p177, %p176
      %p179 = pneg %p178
      %s180 = sadd.s32 %s175, 8
      %s181 = scalar_select %p179, %s180, %s175
      %s182 = smul.addr %s169, 16
      %s183 = scalar_lea.hbm %s1, %s182
      %s184 = scalar_lea.vmem [#allocation5], %s167
      %s185 = scalar_lea.sflag [#allocation2], %s181
      // Predicated region
      $region41: #{tpu_custom_call.1} parent=37 // pred_check
        _
      $region42: #{tpu_custom_call.1} parent=37 // pred_check_branch
        %187 = sbr.rel target = $region44
      $region43: #{tpu_custom_call.1} parent=37 // pred_region
        %188 = sst [smem:[#allocation9]] [#allocation26]
        %189 = sst [smem:[#allocation10]] [#allocation25]
      $region44: #{tpu_custom_call.1} parent=37 // pred_fallthru
        _
      %191 = shalt.err (0)
      %s193 = sshll.u32 %s184, 4
      %s194 = int_to_ptr.vmem [resolvable:$true] %s193
      %196 = dma.hbm_to_vmem [thread:$0]  %s183, 16, %s194, %s185
    $region38: #{tpu_custom_call.1} parent=1 // loop_footer
      %s151 = sadd.s32 1, %s147
    $region39: #{tpu_custom_call.1} parent=1 // loop_footer_branch
      %146 = sbr.rel target = $region35
    $region40: #{tpu_custom_call.1} parent=1 // loop_exit
      _
    %198 = dma.done [#allocation2], 16
    %200 = dma.done %s32, 16
    %202 = dma.done %s49, 16
    %204 = dma.done %s66, 16
    %206 = dma.done %s83, 16
    %208 = dma.done %s100, 16
    %210 = dma.done %s117, 16
    %212 = dma.done %s134, 16
    // Predicated region
    $region45: #{tpu_custom_call.1} parent=1 // pred_check
      _
    $region46: #{tpu_custom_call.1} parent=1 // pred_check_branch
      %214 = sbr.rel (0) target = $region48
    $region47: #{tpu_custom_call.1} parent=1 // pred_region
      %s216 = ssub.s32 256, 256
      %217 = vsyncadd [#allocation6], %s216
      %s218 = sshll.u32 [#allocation5], 4
      %s219 = int_to_ptr.vmem [resolvable:$true] %s218
      %224 = dma.vmem_to_hbm [thread:$0]  %s219, 256, %s2, [#allocation6], 128, 128, 8
    $region48: #{tpu_custom_call.1} parent=1 // pred_fallthru
      _
    // Predicated region
    $region49: #{tpu_custom_call.1} parent=1 // pred_check
      _
    $region50: #{tpu_custom_call.1} parent=1 // pred_check_branch
      %226 = sbr.rel (0) target = $region52
    $region51: #{tpu_custom_call.1} parent=1 // pred_region
      %227 = dma.done [#allocation6], 256
    $region52: #{tpu_custom_call.1} parent=1 // pred_fallthru
      _
    %228 = vsyncpa [#allocation6], 1
  %229 = vsyncmov [#allocation2]
  %s230 = vpop.sfrf %229
  %p231 = scmp.eq.s32.totalorder %s230, 0
  %p232 = pneg %p231
  %234 = shalt.err (%p232)
  %s235 = scalar_lea.sflag [#allocation2], 1
  %236 = vsyncmov %s235
  %s237 = vpop.sfrf %236
  %p238 = scmp.eq.s32.totalorder %s237, 0
  %p239 = pneg %p238
  %241 = shalt.err (%p239)
  %s242 = scalar_lea.sflag [#allocation2], 2
  %243 = vsyncmov %s242
  %s244 = vpop.sfrf %243
  %p245 = scmp.eq.s32.totalorder %s244, 0
  %p246 = pneg %p245
  %248 = shalt.err (%p246)
  %s249 = scalar_lea.sflag [#allocation2], 3
  %250 = vsyncmov %s249
  %s251 = vpop.sfrf %250
  %p252 = scmp.eq.s32.totalorder %s251, 0
  %p253 = pneg %p252
  %255 = shalt.err (%p253)
  %s256 = scalar_lea.sflag [#allocation2], 4
  %257 = vsyncmov %s256
  %s258 = vpop.sfrf %257
  %p259 = scmp.eq.s32.totalorder %s258, 0
  %p260 = pneg %p259
  %262 = shalt.err (%p260)
  %s263 = scalar_lea.sflag [#allocation2], 5
  %264 = vsyncmov %s263
  %s265 = vpop.sfrf %264
  %p266 = scmp.eq.s32.totalorder %s265, 0
  %p267 = pneg %p266
  %269 = shalt.err (%p267)
  %s270 = scalar_lea.sflag [#allocation2], 6
  %271 = vsyncmov %s270
  %s272 = vpop.sfrf %271
  %p273 = scmp.eq.s32.totalorder %s272, 0
  %p274 = pneg %p273
  %276 = shalt.err (%p274)
  %s277 = scalar_lea.sflag [#allocation2], 7
  %278 = vsyncmov %s277
  %s279 = vpop.sfrf %278
  %p280 = scmp.eq.s32.totalorder %s279, 0
  %p281 = pneg %p280
  %283 = shalt.err (%p281)

</llo_original>
